<compile_context>
chip_gen: v7x
topology: tpu7x:2x2x1
jax: 0.10.0
libtpu: 0.0.40
codegen_flags: <defaults>
</compile_context>

<pallas_src>
import jax
import jax.numpy as jnp
from jax import lax
from jax.experimental import pallas as pl
from jax.experimental.pallas import tpu as pltpu

EPS = 1e-5                       # eps of the standard calc_mean_std helper
LANE = 128                       # lane width -> channel padding target
VMEM_LIMIT = 48 * 1024 * 1024    # explicit scoped-VMEM budget (< v7x 64 MiB)


# --------------------------------------------------------------------------
# small helpers (host-side glue)
# --------------------------------------------------------------------------
def _round_up(n, m):
    return ((n + m - 1) // m) * m


def _choose_tile(n, pref, align):
    """Largest divisor of n that is <= pref and a multiple of `align`;
    falls back to the full extent (always layout-legal)."""
    if n <= pref:
        return n
    start = pref - pref % align
    for t in range(start, 0, -align):
        if n % t == 0:
            return t
    return n


def _mvn_stats(x):
    """Per-(batch, channel) spatial mean and reciprocal std (unbiased, +eps).
    x: (B, N, Cp) f32 -> (B, 2, Cp) f32 stacked [mean; rstd]."""
    n = x.shape[1]
    mean = jnp.mean(x, axis=1, keepdims=True)
    var = jnp.sum((x - mean) ** 2, axis=1, keepdims=True) / max(n - 1, 1)
    rstd = lax.rsqrt(var + EPS)
    return jnp.concatenate([mean, rstd], axis=1)


def _identity_stats(b, cp):
    """Stats that make the prep kernel's normalization a no-op."""
    return jnp.concatenate([jnp.zeros((b, 1, cp), jnp.float32),
                            jnp.ones((b, 1, cp), jnp.float32)], axis=1)


def _nchw_to_flat_padded(x_nchw, cp):
    """NCHW -> channels-last flattened (B, H*W, Cp) with zero channel pad."""
    b, c, h, w = x_nchw.shape
    x = jnp.transpose(x_nchw, (0, 2, 3, 1)).reshape(b, h * w, c)
    return jnp.pad(x, ((0, 0), (0, 0), (0, cp - c)))


# --------------------------------------------------------------------------
# Kernel 1: AesSA style prep.  Per style tile:
#   sk = (key - mean) * rstd   (mvn(style), or identity for SA_fusion keys)
#   G^T = (g-conv applied to sk)^T  -> (Cp, tk) bf16
#   [H | H^2] = h-conv(raw style), concatenated lane-wise -> (tk, 2Cp) bf16
# --------------------------------------------------------------------------
def _style_prep_kernel(key_ref, kstat_ref, s_ref, wg_ref, bg_ref, wh_ref,
                       bh_ref, gt_ref, hf_ref):
    key_in = key_ref[0]                               # (tk, Cp) f32
    stats = kstat_ref[0]                              # (2, Cp)  f32
    sk = (key_in - stats[0:1, :]) * stats[1:2, :]     # normalized style key
    # G^T built directly as (Cp, tk): the attention hot loop never transposes.
    gt = lax.dot_general(wg_ref[...], sk.astype(jnp.bfloat16),
                         (((1,), (1,)), ((), ())),
                         preferred_element_type=jnp.float32) + bg_ref[...]
    gt_ref[0] = gt.astype(jnp.bfloat16)
    # h-conv on raw style, fused [H | H^2] -> single moments matmul later.
    style = s_ref[0]                                  # (tk, Cp) f32
    hf = jnp.dot(style.astype(jnp.bfloat16), wh_ref[...],
                 preferred_element_type=jnp.float32) + bh_ref[...]
    hf_ref[0] = jnp.concatenate([hf, hf * hf], axis=-1).astype(jnp.bfloat16)


def _style_prep(key_cl, k_stats, style_cl, wg, bg_col, wh, bh, *, tk):
    b, ns, cp = style_cl.shape
    nk = ns // tk
    return pl.pallas_call(
        _style_prep_kernel,
        out_shape=(jax.ShapeDtypeStruct((b, cp, ns), jnp.bfloat16),
                   jax.ShapeDtypeStruct((b, ns, 2 * cp), jnp.bfloat16)),
        grid=(b, nk),
        in_specs=[
            pl.BlockSpec((1, tk, cp), lambda i, j: (i, j, 0)),
            pl.BlockSpec((1, 2, cp), lambda i, j: (i, 0, 0)),
            pl.BlockSpec((1, tk, cp), lambda i, j: (i, j, 0)),
            pl.BlockSpec((cp, cp), lambda i, j: (0, 0)),
            pl.BlockSpec((cp, 1), lambda i, j: (0, 0)),
            pl.BlockSpec((cp, cp), lambda i, j: (0, 0)),
            pl.BlockSpec((1, cp), lambda i, j: (0, 0)),
        ],
        out_specs=(pl.BlockSpec((1, cp, tk), lambda i, j: (i, 0, j)),
                   pl.BlockSpec((1, tk, 2 * cp), lambda i, j: (i, j, 0))),
        compiler_params=pltpu.CompilerParams(
            dimension_semantics=("parallel", "parallel"),
            vmem_limit_bytes=VMEM_LIMIT),
    )(key_cl, k_stats, style_cl, wg, bg_col, wh, bh)


# --------------------------------------------------------------------------
# Kernel 2: flash-attention-style AesSA core.  grid = (B, Nc/tq, Ns/tk).
# --------------------------------------------------------------------------
def _aessa_attn_kernel(c_ref, cstat_ref, wf_ref, bf_ref, gt_ref, hf_ref,
                       o_ref, f_sc, ck_sc, m_sc, l_sc, acc_sc):
    ki = pl.program_id(2)
    nk = pl.num_programs(2)

    @pl.when(ki == 0)
    def _init():
        content = c_ref[0]                              # (tq, Cp) f32
        stats = cstat_ref[0]                            # (2, Cp)
        ck = (content - stats[0:1, :]) * stats[1:2, :]  # mvn(content), reused
        ck_sc[...] = ck
        f = jnp.dot(ck.astype(jnp.bfloat16), wf_ref[...],
                    preferred_element_type=jnp.float32) + bf_ref[...]
        f_sc[...] = f.astype(jnp.bfloat16)
        m_sc[...] = jnp.full_like(m_sc, -jnp.inf)
        l_sc[...] = jnp.zeros_like(l_sc)
        acc_sc[...] = jnp.zeros_like(acc_sc)

    # scores for this style block: bf16 operands, f32 accumulation.
    s = jnp.dot(f_sc[...], gt_ref[0], preferred_element_type=jnp.float32)
    m_prev = m_sc[...]
    m_new = jnp.maximum(m_prev, jnp.max(s, axis=-1, keepdims=True))
    alpha = jnp.exp(m_prev - m_new)
    p = jnp.exp(s - m_new)
    l_sc[...] = alpha * l_sc[...] + jnp.sum(p, axis=-1, keepdims=True)
    acc_sc[...] = alpha * acc_sc[...] + jnp.dot(
        p.astype(jnp.bfloat16), hf_ref[0], preferred_element_type=jnp.float32)
    m_sc[...] = m_new

    @pl.when(ki == nk - 1)
    def _finalize():
        cp = acc_sc.shape[1] // 2
        inv_l = pl.reciprocal(l_sc[...], approx=True)   # softmax denom on EUP
        mean_s = acc_sc[:, :cp] * inv_l                 # S @ H
        second = acc_sc[:, cp:] * inv_l                 # S @ H^2
        std = jnp.sqrt(jnp.maximum(second - mean_s * mean_s, 0.0))
        o_ref[0] = (std * ck_sc[...] + mean_s).astype(o_ref.dtype)


def _aessa_attention(content_cl, c_stats, wf, bf, gt, hfcat, *, tq, tk):
    b, nc, cp = content_cl.shape
    ns = gt.shape[2]
    grid = (b, nc // tq, ns // tk)
    return pl.pallas_call(
        _aessa_attn_kernel,
        out_shape=jax.ShapeDtypeStruct((b, nc, cp), jnp.float32),
        grid=grid,
        in_specs=[
            pl.BlockSpec((1, tq, cp), lambda i, qi, ki: (i, qi, 0)),
            pl.BlockSpec((1, 2, cp), lambda i, qi, ki: (i, 0, 0)),
            pl.BlockSpec((cp, cp), lambda i, qi, ki: (0, 0)),
            pl.BlockSpec((1, cp), lambda i, qi, ki: (0, 0)),
            pl.BlockSpec((1, cp, tk), lambda i, qi, ki: (i, 0, ki)),
            pl.BlockSpec((1, tk, 2 * cp), lambda i, qi, ki: (i, ki, 0)),
        ],
        out_specs=pl.BlockSpec((1, tq, cp), lambda i, qi, ki: (i, qi, 0)),
        scratch_shapes=[
            pltpu.VMEM((tq, cp), jnp.bfloat16),      # F tile
            pltpu.VMEM((tq, cp), jnp.float32),       # mvn(content) tile
            pltpu.VMEM((tq, 1), jnp.float32),        # running max
            pltpu.VMEM((tq, 1), jnp.float32),        # running sum
            pltpu.VMEM((tq, 2 * cp), jnp.float32),   # [S@H | S@H^2]
        ],
        compiler_params=pltpu.CompilerParams(
            dimension_semantics=("parallel", "parallel", "arbitrary"),
            vmem_limit_bytes=VMEM_LIMIT),
    )(content_cl, c_stats, wf, bf, gt, hfcat)


# --------------------------------------------------------------------------
# Kernels 3/4: SA_fusion (aesthetic_feats branch).
#   prep: K2^T = (conv_f2(x_fss))^T (Cp, tk),  V3 = conv_f3(x_fss) (tk, Cp)
#   attn: Acs = softmax(conv_f1(x_fcc) @ K2^T); x_frs = Acs @ V3;
#         out = conv_frs(x_frs) + x_fcc      (residual fused in finalize)
# --------------------------------------------------------------------------
def _safu_prep_kernel(a_ref, wf2_ref, bf2_ref, wf3_ref, bf3_ref,
                      k2t_ref, v3_ref):
    a = a_ref[0].astype(jnp.bfloat16)                 # (tk, Cp)
    k2t = lax.dot_general(wf2_ref[...], a, (((1,), (1,)), ((), ())),
                          preferred_element_type=jnp.float32) + bf2_ref[...]
    k2t_ref[0] = k2t.astype(jnp.bfloat16)
    v3 = jnp.dot(a, wf3_ref[...],
                 preferred_element_type=jnp.float32) + bf3_ref[...]
    v3_ref[0] = v3.astype(jnp.bfloat16)


def _safu_prep(xfss_cl, wf2, bf2_col, wf3, bf3, *, tk):
    b, ns, cp = xfss_cl.shape
    nk = ns // tk
    return pl.pallas_call(
        _safu_prep_kernel,
        out_shape=(jax.ShapeDtypeStruct((b, cp, ns), jnp.bfloat16),
                   jax.ShapeDtypeStruct((b, ns, cp), jnp.bfloat16)),
        grid=(b, nk),
        in_specs=[
            pl.BlockSpec((1, tk, cp), lambda i, j: (i, j, 0)),
            pl.BlockSpec((cp, cp), lambda i, j: (0, 0)),
            pl.BlockSpec((cp, 1), lambda i, j: (0, 0)),
            pl.BlockSpec((cp, cp), lambda i, j: (0, 0)),
            pl.BlockSpec((1, cp), lambda i, j: (0, 0)),
        ],
        out_specs=(pl.BlockSpec((1, cp, tk), lambda i, j: (i, 0, j)),
                   pl.BlockSpec((1, tk, cp), lambda i, j: (i, j, 0))),
        compiler_params=pltpu.CompilerParams(
            dimension_semantics=("parallel", "parallel"),
            vmem_limit_bytes=VMEM_LIMIT),
    )(xfss_cl, wf2, bf2_col, wf3, bf3)


def _safu_attn_kernel(x_ref, wf1_ref, bf1_ref, wfrs_ref, bfrs_ref,
                      k2t_ref, v3_ref, o_ref, q_sc, m_sc, l_sc, acc_sc):
    ki = pl.program_id(2)
    nk = pl.num_programs(2)

    @pl.when(ki == 0)
    def _init():
        x = x_ref[0]                                   # (tq, Cp) f32
        q = jnp.dot(x.astype(jnp.bfloat16), wf1_ref[...],
                    preferred_element_type=jnp.float32) + bf1_ref[...]
        q_sc[...] = q.astype(jnp.bfloat16)
        m_sc[...] = jnp.full_like(m_sc, -jnp.inf)
        l_sc[...] = jnp.zeros_like(l_sc)
        acc_sc[...] = jnp.zeros_like(acc_sc)

    s = jnp.dot(q_sc[...], k2t_ref[0], preferred_element_type=jnp.float32)
    m_prev = m_sc[...]
    m_new = jnp.maximum(m_prev, jnp.max(s, axis=-1, keepdims=True))
    alpha = jnp.exp(m_prev - m_new)
    p = jnp.exp(s - m_new)
    l_sc[...] = alpha * l_sc[...] + jnp.sum(p, axis=-1, keepdims=True)
    acc_sc[...] = alpha * acc_sc[...] + jnp.dot(
        p.astype(jnp.bfloat16), v3_ref[0], preferred_element_type=jnp.float32)
    m_sc[...] = m_new

    @pl.when(ki == nk - 1)
    def _finalize():
        inv_l = pl.reciprocal(l_sc[...], approx=True)
        x_frs = acc_sc[...] * inv_l                    # Acs @ V3
        y = jnp.dot(x_frs.astype(jnp.bfloat16), wfrs_ref[...],
                    preferred_element_type=jnp.float32) + bfrs_ref[...]
        o_ref[0] = (y + x_ref[0]).astype(o_ref.dtype)  # conv_frs(..) + x_fcc


def _safu_attention(xfcc_cl, wf1, bf1, wfrs, bfrs, k2t, v3, *, tq, tk):
    b, nq, cp = xfcc_cl.shape
    ns = k2t.shape[2]
    grid = (b, nq // tq, ns // tk)
    return pl.pallas_call(
        _safu_attn_kernel,
        out_shape=jax.ShapeDtypeStruct((b, nq, cp), jnp.float32),
        grid=grid,
        in_specs=[
            pl.BlockSpec((1, tq, cp), lambda i, qi, ki: (i, qi, 0)),
            pl.BlockSpec((cp, cp), lambda i, qi, ki: (0, 0)),
            pl.BlockSpec((1, cp), lambda i, qi, ki: (0, 0)),
            pl.BlockSpec((cp, cp), lambda i, qi, ki: (0, 0)),
            pl.BlockSpec((1, cp), lambda i, qi, ki: (0, 0)),
            pl.BlockSpec((1, cp, tk), lambda i, qi, ki: (i, 0, ki)),
            pl.BlockSpec((1, tk, cp), lambda i, qi, ki: (i, ki, 0)),
        ],
        out_specs=pl.BlockSpec((1, tq, cp), lambda i, qi, ki: (i, qi, 0)),
        scratch_shapes=[
            pltpu.VMEM((tq, cp), jnp.bfloat16),      # Q = conv_f1(x_fcc) tile
            pltpu.VMEM((tq, 1), jnp.float32),        # running max
            pltpu.VMEM((tq, 1), jnp.float32),        # running sum
            pltpu.VMEM((tq, cp), jnp.float32),       # Acs @ V3
        ],
        compiler_params=pltpu.CompilerParams(
            dimension_semantics=("parallel", "parallel", "arbitrary"),
            vmem_limit_bytes=VMEM_LIMIT),
    )(xfcc_cl, wf1, bf1, wfrs, bfrs, k2t, v3)


def sa_fusion_channels_last(xfcc_cl, xfss_cl, p, *, tq_pref=256, tk_pref=512):
    b, nq, cp = xfcc_cl.shape
    nk = xfss_cl.shape[1]
    tq = _choose_tile(nq, tq_pref, 8)
    tk = _choose_tile(nk, tk_pref, LANE)
    k2t, v3 = _safu_prep(xfss_cl, p["wf2"], p["bf2"], p["wf3"], p["bf3"], tk=tk)
    return _safu_attention(xfcc_cl, p["wf1"], p["bf1"], p["wfrs"], p["bfrs"],
                           k2t, v3, tq=tq, tk=tk)


# --------------------------------------------------------------------------
# AesSA wrappers
# --------------------------------------------------------------------------
def aessa_channels_last(content_cl, style_cl, p, style_key_cl=None,
                        *, tq_pref=256, tk_pref=512):
    """AesSA core on channel-padded (B, N, Cp) inputs.  If style_key_cl is
    given (SA_fusion output) it is used directly; otherwise mvn(style)."""
    b, nc, cp = content_cl.shape
    ns = style_cl.shape[1]
    tq = _choose_tile(nc, tq_pref, 8)
    tk = _choose_tile(ns, tk_pref, LANE)
    c_stats = _mvn_stats(content_cl)   # whole-extent reductions (XLA glue)
    if style_key_cl is None:
        key_cl = style_cl
        k_stats = _mvn_stats(style_cl)
    else:
        key_cl = style_key_cl
        k_stats = _identity_stats(b, cp)
    gt, hfcat = _style_prep(key_cl, k_stats, style_cl, p["wg"], p["bg"],
                            p["wh"], p["bh"], tk=tk)
    return _aessa_attention(content_cl, c_stats, p["wf"], p["bf"],
                            gt, hfcat, tq=tq, tk=tk)


def aessa_forward(content_nchw, style_nchw, p, aesthetic_feats=None):
    """AesSA.forward equivalent (NCHW in / NCHW out), both branches."""
    b, c, h, w = content_nchw.shape
    cp = p["wf"].shape[0]
    content_cl = _nchw_to_flat_padded(content_nchw, cp)
    style_cl = _nchw_to_flat_padded(style_nchw, cp)
    if aesthetic_feats is not None:
        aest_cl = _nchw_to_flat_padded(aesthetic_feats, cp)
        style_key_cl = sa_fusion_channels_last(style_cl, aest_cl,
                                               p["sa_fusion"])
    else:
        style_key_cl = None
    out = aessa_channels_last(content_cl, style_cl, p, style_key_cl)
    out = out[:, :, :c].reshape(b, h, w, c)
    return jnp.transpose(out, (0, 3, 1, 2))


# --------------------------------------------------------------------------
# deterministic synthetic parameters (torch Conv2d layouts, padded to Cp)
# --------------------------------------------------------------------------
def _pad2(w, cp):
    c = w.shape[0]
    return jnp.pad(w, ((0, cp - c), (0, cp - c)))


def init_sa_fusion_params(key, c, cp):
    ks = jax.random.split(key, 8)
    pad = cp - c
    w1 = jax.random.normal(ks[0], (c, c), jnp.float32) * 0.05
    w2 = jax.random.normal(ks[2], (c, c), jnp.float32) * 0.05
    w3 = jax.random.normal(ks[4], (c, c), jnp.float32) * 0.05
    wrs = jax.random.normal(ks[6], (c, c), jnp.float32) * 0.05
    b1 = jax.random.normal(ks[1], (c,), jnp.float32) * 0.05
    b2 = jax.random.normal(ks[3], (c,), jnp.float32) * 0.05
    b3 = jax.random.normal(ks[5], (c,), jnp.float32) * 0.05
    brs = jax.random.normal(ks[7], (c,), jnp.float32) * 0.05
    return {
        # conv_f1 / conv_f3 / conv_frs stored as (in, out) bf16 for `x @ W`
        "wf1": _pad2(w1.T, cp).astype(jnp.bfloat16),
        "bf1": jnp.pad(b1, (0, pad))[None, :],
        # conv_f2 kept in torch (out, in) layout bf16 -> K2^T directly
        "wf2": _pad2(w2, cp).astype(jnp.bfloat16),
        "bf2": jnp.pad(b2, (0, pad))[:, None],
        "wf3": _pad2(w3.T, cp).astype(jnp.bfloat16),
        "bf3": jnp.pad(b3, (0, pad))[None, :],
        "wfrs": _pad2(wrs.T, cp).astype(jnp.bfloat16),
        "bfrs": jnp.pad(brs, (0, pad))[None, :],
    }


def init_aessa_params(key, c):
    # NOTE: the unused d/e/o1/out_conv1/out_conv2 layers of AesSA never appear
    # in forward() and are therefore not materialized.
    cp = _round_up(c, LANE)
    ks = jax.random.split(key, 7)
    wf_t = jax.random.normal(ks[0], (c, c), jnp.float32) * 0.05
    wg_t = jax.random.normal(ks[2], (c, c), jnp.float32) * 0.05
    wh_t = jax.random.normal(ks[4], (c, c), jnp.float32) * 0.05
    bf_t = jax.random.normal(ks[1], (c,), jnp.float32) * 0.05
    bg_t = jax.random.normal(ks[3], (c,), jnp.float32) * 0.05
    bh_t = jax.random.normal(ks[5], (c,), jnp.float32) * 0.05
    pad = cp - c
    return {
        # f / h convs stored as (in, out) bf16 for `x @ W`
        "wf": _pad2(wf_t.T, cp).astype(jnp.bfloat16),
        "bf": jnp.pad(bf_t, (0, pad))[None, :],
        # g conv kept in torch (out, in) layout bf16: G^T = dot_general(wg, sk)
        "wg": _pad2(wg_t, cp).astype(jnp.bfloat16),
        "bg": jnp.pad(bg_t, (0, pad))[:, None],
        "wh": _pad2(wh_t.T, cp).astype(jnp.bfloat16),
        "bh": jnp.pad(bh_t, (0, pad))[None, :],
        "sa_fusion": init_sa_fusion_params(ks[6], c, cp),
    }


if __name__ == "__main__":
    key = jax.random.PRNGKey(0)
    k_in, k_par = jax.random.split(key)
    kc, ks, ka = jax.random.split(k_in, 3)

    B, C, H, W = 2, 32, 8, 8
    content = jax.random.normal(kc, (B, C, H, W), jnp.float32)
    style = jax.random.normal(ks, (B, C, H, W), jnp.float32)
    aesthetic = jax.random.normal(ka, (B, C, H, W), jnp.float32)

    params = init_aessa_params(k_par, C)

    # AesSA forward, aesthetic_feats=None path (mvn(style) key).
    out_plain = jax.block_until_ready(aessa_forward(content, style, params))
    assert out_plain.shape == (B, C, H, W) and out_plain.dtype == jnp.float32
    assert bool(jnp.all(jnp.isfinite(out_plain)))

    # AesSA forward, aesthetic_feats path (SA_fusion style key).
    out_aes = jax.block_until_ready(
        aessa_forward(content, style, params, aesthetic_feats=aesthetic))
    assert out_aes.shape == (B, C, H, W) and out_aes.dtype == jnp.float32
    assert bool(jnp.all(jnp.isfinite(out_aes)))

    print("KERNEL_OK")
</pallas_src>

<mosaic_0001>
module attributes {stable_mosaic.version = 11 : i64} {
  func.func @_style_prep_kernel(%arg0: i32, %arg1: i32, %arg2: memref<1x64x128xf32, #tpu.memory_space<vmem>>, %arg3: memref<1x2x128xf32, #tpu.memory_space<vmem>>, %arg4: memref<1x64x128xf32, #tpu.memory_space<vmem>>, %arg5: memref<128x128xbf16, #tpu.memory_space<vmem>>, %arg6: memref<128x1xf32, #tpu.memory_space<vmem>>, %arg7: memref<128x128xbf16, #tpu.memory_space<vmem>>, %arg8: memref<1x128xf32, #tpu.memory_space<vmem>>, %arg9: memref<1x128x64xbf16, #tpu.memory_space<vmem>>, %arg10: memref<1x64x256xbf16, #tpu.memory_space<vmem>>) attributes {dimension_semantics = [#tpu.dimension_semantics<parallel>, #tpu.dimension_semantics<parallel>], iteration_bounds = array<i64: 2, 1>, scalar_prefetch = 0 : i64, scratch_operands = 0 : i64, tpu.core_type = #tpu.core_type<tc>, window_params = [{transform_indices = @transform_0, window_bounds = array<i64: 1, 64, 128>}, {transform_indices = @transform_1, window_bounds = array<i64: 1, 2, 128>}, {transform_indices = @transform_2, window_bounds = array<i64: 1, 64, 128>}, {pipeline_mode = #tpu.pipeline_mode<synchronous>, transform_indices = @transform_3, window_bounds = array<i64: 128, 128>}, {pipeline_mode = #tpu.pipeline_mode<synchronous>, transform_indices = @transform_4, window_bounds = array<i64: 128, 1>}, {pipeline_mode = #tpu.pipeline_mode<synchronous>, transform_indices = @transform_5, window_bounds = array<i64: 128, 128>}, {pipeline_mode = #tpu.pipeline_mode<synchronous>, transform_indices = @transform_6, window_bounds = array<i64: 1, 128>}, {transform_indices = @transform_7, window_bounds = array<i64: 1, 128, 64>}, {transform_indices = @transform_8, window_bounds = array<i64: 1, 64, 256>}]} {
    %c0 = arith.constant 0 : index
    %c0_0 = arith.constant 0 : index
    %c0_1 = arith.constant 0 : index
    %0 = vector.load %arg2[%c0, %c0_0, %c0_1] : memref<1x64x128xf32, #tpu.memory_space<vmem>>, vector<1x64x128xf32>
    %1 = vector.shape_cast %0 : vector<1x64x128xf32> to vector<64x128xf32>
    %c0_2 = arith.constant 0 : index
    %c0_3 = arith.constant 0 : index
    %c0_4 = arith.constant 0 : index
    %2 = vector.load %arg3[%c0_2, %c0_3, %c0_4] : memref<1x2x128xf32, #tpu.memory_space<vmem>>, vector<1x2x128xf32>
    %3 = vector.shape_cast %2 : vector<1x2x128xf32> to vector<2x128xf32>
    %4 = vector.extract_strided_slice %3 {offsets = [0, 0], sizes = [1, 128], strides = [1, 1]} : vector<2x128xf32> to vector<1x128xf32>
    %5 = vector.broadcast %4 : vector<1x128xf32> to vector<64x128xf32>
    %6 = arith.subf %1, %5 : vector<64x128xf32>
    %7 = vector.extract_strided_slice %3 {offsets = [1, 0], sizes = [1, 128], strides = [1, 1]} : vector<2x128xf32> to vector<1x128xf32>
    %8 = vector.broadcast %7 : vector<1x128xf32> to vector<64x128xf32>
    %9 = arith.mulf %6, %8 : vector<64x128xf32>
    %c0_5 = arith.constant 0 : index
    %c0_6 = arith.constant 0 : index
    %10 = vector.load %arg5[%c0_5, %c0_6] : memref<128x128xbf16, #tpu.memory_space<vmem>>, vector<128x128xbf16>
    %11 = arith.truncf %9 : vector<64x128xf32> to vector<64x128xbf16>
    %cst = arith.constant dense<0.000000e+00> : vector<128x64xf32>
    %12 = tpu.matmul %10, %11, %cst {dimension_numbers = #tpu.dot_dimension_numbers<[1], [1], [0], [0], [0, 0, 1, 0], [], []>} : vector<128x128xbf16>, vector<64x128xbf16>, vector<128x64xf32> -> vector<128x64xf32>
    %c0_7 = arith.constant 0 : index
    %c0_8 = arith.constant 0 : index
    %13 = vector.load %arg6[%c0_7, %c0_8] : memref<128x1xf32, #tpu.memory_space<vmem>>, vector<128x1xf32>
    %14 = vector.broadcast %13 : vector<128x1xf32> to vector<128x64xf32>
    %15 = arith.addf %12, %14 : vector<128x64xf32>
    %16 = arith.truncf %15 : vector<128x64xf32> to vector<128x64xbf16>
    %c0_9 = arith.constant 0 : index
    %c0_10 = arith.constant 0 : index
    %c0_11 = arith.constant 0 : index
    %17 = vector.load %arg9[%c0_9, %c0_10, %c0_11] : memref<1x128x64xbf16, #tpu.memory_space<vmem>>, vector<1x128x64xbf16>
    %18 = vector.shape_cast %17 : vector<1x128x64xbf16> to vector<128x64xbf16>
    %19 = vector.shape_cast %16 : vector<128x64xbf16> to vector<1x128x64xbf16>
    tpu.vector_store %arg9[%c0_9, %c0_10, %c0_11], %19 {strides = array<i32>} : memref<1x128x64xbf16, #tpu.memory_space<vmem>>, vector<1x128x64xbf16>,
    %c0_12 = arith.constant 0 : index
    %c0_13 = arith.constant 0 : index
    %c0_14 = arith.constant 0 : index
    %20 = vector.load %arg4[%c0_12, %c0_13, %c0_14] : memref<1x64x128xf32, #tpu.memory_space<vmem>>, vector<1x64x128xf32>
    %21 = vector.shape_cast %20 : vector<1x64x128xf32> to vector<64x128xf32>
    %22 = arith.truncf %21 : vector<64x128xf32> to vector<64x128xbf16>
    %c0_15 = arith.constant 0 : index
    %c0_16 = arith.constant 0 : index
    %23 = vector.load %arg7[%c0_15, %c0_16] : memref<128x128xbf16, #tpu.memory_space<vmem>>, vector<128x128xbf16>
    %cst_17 = arith.constant dense<0.000000e+00> : vector<64x128xf32>
    %24 = tpu.matmul %22, %23, %cst_17 {dimension_numbers = #tpu.dot_dimension_numbers<[1], [0], [0], [1], [0, 0, 1, 1], [], []>} : vector<64x128xbf16>, vector<128x128xbf16>, vector<64x128xf32> -> vector<64x128xf32>
    %c0_18 = arith.constant 0 : index
    %c0_19 = arith.constant 0 : index
    %25 = vector.load %arg8[%c0_18, %c0_19] : memref<1x128xf32, #tpu.memory_space<vmem>>, vector<1x128xf32>
    %26 = vector.broadcast %25 : vector<1x128xf32> to vector<64x128xf32>
    %27 = arith.addf %24, %26 : vector<64x128xf32>
    %28 = arith.mulf %27, %27 : vector<64x128xf32>
    %29 = tpu.concatenate %27, %28 in 1 : vector<64x128xf32>, vector<64x128xf32> -> vector<64x256xf32>
    %30 = arith.truncf %29 : vector<64x256xf32> to vector<64x256xbf16>
    %c0_20 = arith.constant 0 : index
    %c0_21 = arith.constant 0 : index
    %c0_22 = arith.constant 0 : index
    %31 = vector.load %arg10[%c0_20, %c0_21, %c0_22] : memref<1x64x256xbf16, #tpu.memory_space<vmem>>, vector<1x64x256xbf16>
    %32 = vector.shape_cast %31 : vector<1x64x256xbf16> to vector<64x256xbf16>
    %33 = vector.shape_cast %30 : vector<64x256xbf16> to vector<1x64x256xbf16>
    tpu.vector_store %arg10[%c0_20, %c0_21, %c0_22], %33 {strides = array<i32>} : memref<1x64x256xbf16, #tpu.memory_space<vmem>>, vector<1x64x256xbf16>,
    return
  }
  func.func @transform_0(%arg0: i32, %arg1: i32) -> (i32, i32, i32) {
    %c0_i32 = arith.constant 0 : i32
    %c0_i32_0 = arith.constant 0 : i32
    return %arg0, %arg1, %c0_i32 : i32, i32, i32
  }
  func.func @transform_1(%arg0: i32, %arg1: i32) -> (i32, i32, i32) {
    %c0_i32 = arith.constant 0 : i32
    %c0_i32_0 = arith.constant 0 : i32
    %c0_i32_1 = arith.constant 0 : i32
    return %arg0, %c0_i32, %c0_i32_0 : i32, i32, i32
  }
  func.func @transform_2(%arg0: i32, %arg1: i32) -> (i32, i32, i32) {
    %c0_i32 = arith.constant 0 : i32
    %c0_i32_0 = arith.constant 0 : i32
    return %arg0, %arg1, %c0_i32 : i32, i32, i32
  }
  func.func @transform_3(%arg0: i32, %arg1: i32) -> (i32, i32) {
    %c0_i32 = arith.constant 0 : i32
    %c0_i32_0 = arith.constant 0 : i32
    %c0_i32_1 = arith.constant 0 : i32
    return %c0_i32, %c0_i32_0 : i32, i32
  }
  func.func @transform_4(%arg0: i32, %arg1: i32) -> (i32, i32) {
    %c0_i32 = arith.constant 0 : i32
    %c0_i32_0 = arith.constant 0 : i32
    %c0_i32_1 = arith.constant 0 : i32
    return %c0_i32, %c0_i32_0 : i32, i32
  }
  func.func @transform_5(%arg0: i32, %arg1: i32) -> (i32, i32) {
    %c0_i32 = arith.constant 0 : i32
    %c0_i32_0 = arith.constant 0 : i32
    %c0_i32_1 = arith.constant 0 : i32
    return %c0_i32, %c0_i32_0 : i32, i32
  }
  func.func @transform_6(%arg0: i32, %arg1: i32) -> (i32, i32) {
    %c0_i32 = arith.constant 0 : i32
    %c0_i32_0 = arith.constant 0 : i32
    %c0_i32_1 = arith.constant 0 : i32
    return %c0_i32, %c0_i32_0 : i32, i32
  }
  func.func @transform_7(%arg0: i32, %arg1: i32) -> (i32, i32, i32) {
    %c0_i32 = arith.constant 0 : i32
    %c0_i32_0 = arith.constant 0 : i32
    return %arg0, %c0_i32, %arg1 : i32, i32, i32
  }
  func.func @transform_8(%arg0: i32, %arg1: i32) -> (i32, i32, i32) {
    %c0_i32 = arith.constant 0 : i32
    %c0_i32_0 = arith.constant 0 : i32
    return %arg0, %arg1, %c0_i32 : i32, i32, i32
  }
}

</mosaic_0001>

<llo_original>
// kernel: tpu_custom_call.1
$region0: #{tpu_custom_call.1}
  #allocation0 [shape = 'u32[]', space=smem, size = 0x4, offset = 0x4, fixed_abs, tag = 'smem constant byte address 0x4 - core index']
  #allocation1 [shape = 'u32[144,128]{1,0:T(1,128)}', space=vmem, size = 0x12000, scoped, tag = 'internal scratch']
  %s0 = inlined_call_operand.vmem [shape: f32[2,64,128], index: 0, kind: input, shape index: {}]
  %s1 = inlined_call_operand.vmem [shape: f32[2,2,128], index: 1, kind: input, shape index: {}]
  %s2 = inlined_call_operand.hbm [shape: f32[2,64,128], index: 2, kind: input, shape index: {}]
  %s3 = inlined_call_operand.hbm [shape: bf16[128,128], index: 3, kind: input, shape index: {}]
  %s4 = inlined_call_operand.vmem [shape: f32[128,1], index: 4, kind: input, shape index: {}]
  %s5 = inlined_call_operand.hbm [shape: bf16[128,128], index: 5, kind: input, shape index: {}]
  %s6 = inlined_call_operand.vmem [shape: f32[1,128], index: 6, kind: input, shape index: {}]
  %s7 = inlined_call_operand.vmem [shape: bf16[2,128,64], index: 7, kind: output, shape index: {0}]
  %s8 = inlined_call_operand.hbm [shape: bf16[2,64,256], index: 8, kind: output, shape index: {1}]
  %9 = xla_tuple %s7, %s8
  %s10 = sld [smem:[#allocation0]]
  $region81: #{tpu_custom_call.1} parent=0
    _
  %s12 = ssub.s32 1, %s10
  %s13 = scalar_select 0, %s12, %s10
  $region1: #{tpu_custom_call.1} parent=0
    #allocation2 [shape = 'u8[65536]{0}', space=vmem, size = 0x10000, scoped, tag = 'input window, operand 2']
    #allocation3 [shape = 's32[2]{0}', space=sflag, size = 0x8, scoped, tag = 'scoped memory for tpu_custom_call.1']
    #allocation4 [shape = 's32[2]{0}', space=sflag, size = 0x8, scoped, tag = 'scoped memory for tpu_custom_call.1']
    #allocation5 [shape = 'u8[32768]{0}', space=vmem, size = 0x8000, scoped, tag = 'input window, operand 3, single buffered']
    #allocation6 [shape = 's32[1]{0}', space=sflag, size = 0x4, scoped, tag = 'scoped memory for tpu_custom_call.1']
    #allocation7 [shape = 'u8[32768]{0}', space=vmem, size = 0x8000, scoped, tag = 'input window, operand 5, single buffered']
    #allocation8 [shape = 'u8[65536]{0}', space=vmem, size = 0x10000, scoped, tag = 'output window, operand 1']
    %14 = vsyncpa [#allocation3], 0
    %s15 = scalar_lea.sflag [#allocation3], 1
    %16 = vsyncpa %s15, 0
    %17 = vsyncpa [#allocation6], 0
    %18 = vsyncpa [#allocation4], 0
    %s19 = scalar_lea.sflag [#allocation4], 1
    %20 = vsyncpa %s19, 0
    loop: start=0, step=1, limit=4
    $region2: #{tpu_custom_call.1} parent=1 // loop_pre_header
      _
    $region3: #{tpu_custom_call.1} parent=1 // loop_header
      %s22 = sphi 0, %s26
      %p23 = scmp.ge.s32.totalorder %s22, 4
      %s29 = sphi 0, %s41
      %s30 = sphi 0, %s37
      %s31 = sphi 0, %s29
      %s32 = sphi 0, %s30
      %s33 = sphi 0, %s31
      %s34 = sphi 0, %s32
      %s46 = sphi 0, %s48
      %s49 = sphi 0, %s46
      %s50 = sphi 0, %s49
      %s66 = sphi 0, %s50
      %s72 = sphi 0, %s74
      %s75 = sphi 0, %s72
      %s76 = sphi 0, %s75
      %s92 = sphi 0, %s76
      %s100 = sphi 0, %s102
      %s103 = sphi 0, %s100
      %s104 = sphi 0, %s103
      %s120 = sphi 0, %s104
      %s124 = sphi 0, %s124
      %s126 = sphi 0, %s124
      %s127 = sphi 0, %s126
      %s141 = sphi 0, %s127
      %s145 = sphi 0, %s145
      %s147 = sphi 0, %s145
      %s148 = sphi 0, %s147
      %s162 = sphi 0, %s148
      %s166 = sphi 0, %s166
      %s168 = sphi 0, %s166
      %s169 = sphi 0, %s168
      %s183 = sphi 0, %s169
      %s187 = sphi 0, %s187
      %s189 = sphi 0, %s187
      %s190 = sphi 0, %s189
      %s204 = sphi 0, %s190
      %s212 = sphi 0, %s214
      %s215 = sphi 0, %s212
      %s216 = sphi 0, %s215
      %s232 = sphi 0, %s216
      %s240 = sphi 0, %s242
      %s243 = sphi 0, %s240
      %s244 = sphi 0, %s243
      %s260 = sphi 0, %s244
    $region4: #{tpu_custom_call.1} parent=1 // loop_header_branch
      %25 = sbr.rel (%p23) target = $region8
    $region5: #{tpu_custom_call.1} parent=1 // loop_body
      %s27 = ssub.s32 %s22, 1
      %s28 = ssub.s32 %s22, 2
      %s35 = sadd.s32 1, %s30
      %p36 = scmp.ge.s32.totalorder %s35, 1
      %s37 = scalar_select %p36, 0, %s35
      %s38 = sadd.s32 1, %s29
      %s39 = scalar_select %p36, %s38, %s29
      %p40 = scmp.ge.s32.totalorder %s39, 2
      %s41 = scalar_select %p40, 0, %s39
      %s42 = ssub.s32 %s29, %s41
      %s43 = ssub.s32 %s30, %s37
      %s44 = sor.u32 %s42, %s43
      %p45 = scmp.eq.s32.totalorder %s44, 0
      %s47 = sadd.s32 %s46, 1
      %s48 = scalar_select %p45, %s46, %s47
      %p51 = pneg %p45
      %p52 = scmp.eq.s32.totalorder %s22, 1
      %p53 = por %p51, %p52
      %p54 = scmp.ne.s32.totalorder %s46, %s49
      %p55 = scmp.eq.s32.totalorder %s22, 0
      %p56 = por %p54, %p55
      %p57 = scmp.ne.s32.totalorder %s46, %s49
      %p58 = scmp.eq.s32.totalorder %s27, 1
      %p59 = por %p57, %p58
      %p60 = scmp.ne.s32.totalorder %s49, %s50
      %p61 = scmp.eq.s32.totalorder %s27, 0
      %p62 = por %p60, %p61
      %p63 = scmp.ne.s32.totalorder %s49, %s50
      %p64 = scmp.eq.s32.totalorder %s28, 1
      %p65 = por %p63, %p64
      %p67 = scmp.ne.s32.totalorder %s50, %s66
      %p68 = scmp.eq.s32.totalorder %s28, 0
      %p69 = por %p67, %p68
      %s70 = ssub.s32 %s29, %s41
      %p71 = scmp.eq.s32.totalorder %s70, 0
      %s73 = sadd.s32 %s72, 1
      %s74 = scalar_select %p71, %s72, %s73
      %p77 = pneg %p71
      %p78 = scmp.eq.s32.totalorder %s22, 1
      %p79 = por %p77, %p78
      %p80 = scmp.ne.s32.totalorder %s72, %s75
      %p81 = scmp.eq.s32.totalorder %s22, 0
      %p82 = por %p80, %p81
      %p83 = scmp.ne.s32.totalorder %s72, %s75
      %p84 = scmp.eq.s32.totalorder %s27, 1
      %p85 = por %p83, %p84
      %p86 = scmp.ne.s32.totalorder %s75, %s76
      %p87 = scmp.eq.s32.totalorder %s27, 0
      %p88 = por %p86, %p87
      %p89 = scmp.ne.s32.totalorder %s75, %s76
      %p90 = scmp.eq.s32.totalorder %s28, 1
      %p91 = por %p89, %p90
      %p93 = scmp.ne.s32.totalorder %s76, %s92
      %p94 = scmp.eq.s32.totalorder %s28, 0
      %p95 = por %p93, %p94
      %s96 = ssub.s32 %s29, %s41
      %s97 = ssub.s32 %s30, %s37
      %s98 = sor.u32 %s96, %s97
      %p99 = scmp.eq.s32.totalorder %s98, 0
      %s101 = sadd.s32 %s100, 1
      %s102 = scalar_select %p99, %s100, %s101
      %p105 = pneg %p99
      %p106 = scmp.eq.s32.totalorder %s22, 1
      %p107 = por %p105, %p106
      %p108 = scmp.ne.s32.totalorder %s100, %s103
      %p109 = scmp.eq.s32.totalorder %s22, 0
      %p110 = por %p108, %p109
      %p111 = scmp.ne.s32.totalorder %s100, %s103
      %p112 = scmp.eq.s32.totalorder %s27, 1
      %p113 = por %p111, %p112
      %p114 = scmp.ne.s32.totalorder %s103, %s104
      %p115 = scmp.eq.s32.totalorder %s27, 0
      %p116 = por %p114, %p115
      %p117 = scmp.ne.s32.totalorder %s103, %s104
      %p118 = scmp.eq.s32.totalorder %s28, 1
      %p119 = por %p117, %p118
      %p121 = scmp.ne.s32.totalorder %s104, %s120
      %p122 = scmp.eq.s32.totalorder %s28, 0
      %p123 = por %p121, %p122
      %s125 = sadd.s32 %s124, 1
      %p128 = scmp.eq.s32.totalorder %s22, 1
      %p129 = scmp.ne.s32.totalorder %s124, %s126
      %p130 = scmp.eq.s32.totalorder %s22, 0
      %p131 = por %p129, %p130
      %p132 = scmp.ne.s32.totalorder %s124, %s126
      %p133 = scmp.eq.s32.totalorder %s27, 1
      %p134 = por %p132, %p133
      %p135 = scmp.ne.s32.totalorder %s126, %s127
      %p136 = scmp.eq.s32.totalorder %s27, 0
      %p137 = por %p135, %p136
      %p138 = scmp.ne.s32.totalorder %s126, %s127
      %p139 = scmp.eq.s32.totalorder %s28, 1
      %p140 = por %p138, %p139
      %p142 = scmp.ne.s32.totalorder %s127, %s141
      %p143 = scmp.eq.s32.totalorder %s28, 0
      %p144 = por %p142, %p143
      %s146 = sadd.s32 %s145, 1
      %p149 = scmp.eq.s32.totalorder %s22, 1
      %p150 = scmp.ne.s32.totalorder %s145, %s147
      %p151 = scmp.eq.s32.totalorder %s22, 0
      %p152 = por %p150, %p151
      %p153 = scmp.ne.s32.totalorder %s145, %s147
      %p154 = scmp.eq.s32.totalorder %s27, 1
      %p155 = por %p153, %p154
      %p156 = scmp.ne.s32.totalorder %s147, %s148
      %p157 = scmp.eq.s32.totalorder %s27, 0
      %p158 = por %p156, %p157
      %p159 = scmp.ne.s32.totalorder %s147, %s148
      %p160 = scmp.eq.s32.totalorder %s28, 1
      %p161 = por %p159, %p160
      %p163 = scmp.ne.s32.totalorder %s148, %s162
      %p164 = scmp.eq.s32.totalorder %s28, 0
      %p165 = por %p163, %p164
      %s167 = sadd.s32 %s166, 1
      %p170 = scmp.eq.s32.totalorder %s22, 1
      %p171 = scmp.ne.s32.totalorder %s166, %s168
      %p172 = scmp.eq.s32.totalorder %s22, 0
      %p173 = por %p171, %p172
      %p174 = scmp.ne.s32.totalorder %s166, %s168
      %p175 = scmp.eq.s32.totalorder %s27, 1
      %p176 = por %p174, %p175
      %p177 = scmp.ne.s32.totalorder %s168, %s169
      %p178 = scmp.eq.s32.totalorder %s27, 0
      %p179 = por %p177, %p178
      %p180 = scmp.ne.s32.totalorder %s168, %s169
      %p181 = scmp.eq.s32.totalorder %s28, 1
      %p182 = por %p180, %p181
      %p184 = scmp.ne.s32.totalorder %s169, %s183
      %p185 = scmp.eq.s32.totalorder %s28, 0
      %p186 = por %p184, %p185
      %s188 = sadd.s32 %s187, 1
      %p191 = scmp.eq.s32.totalorder %s22, 1
      %p192 = scmp.ne.s32.totalorder %s187, %s189
      %p193 = scmp.eq.s32.totalorder %s22, 0
      %p194 = por %p192, %p193
      %p195 = scmp.ne.s32.totalorder %s187, %s189
      %p196 = scmp.eq.s32.totalorder %s27, 1
      %p197 = por %p195, %p196
      %p198 = scmp.ne.s32.totalorder %s189, %s190
      %p199 = scmp.eq.s32.totalorder %s27, 0
      %p200 = por %p198, %p199
      %p201 = scmp.ne.s32.totalorder %s189, %s190
      %p202 = scmp.eq.s32.totalorder %s28, 1
      %p203 = por %p201, %p202
      %p205 = scmp.ne.s32.totalorder %s190, %s204
      %p206 = scmp.eq.s32.totalorder %s28, 0
      %p207 = por %p205, %p206
      %s208 = ssub.s32 %s29, %s41
      %s209 = ssub.s32 %s30, %s37
      %s210 = sor.u32 %s208, %s209
      %p211 = scmp.eq.s32.totalorder %s210, 0
      %s213 = sadd.s32 %s212, 1
      %s214 = scalar_select %p211, %s212, %s213
      %p217 = pneg %p211
      %p218 = scmp.eq.s32.totalorder %s22, 1
      %p219 = por %p217, %p218
      %p220 = scmp.ne.s32.totalorder %s212, %s215
      %p221 = scmp.eq.s32.totalorder %s22, 0
      %p222 = por %p220, %p221
      %p223 = scmp.ne.s32.totalorder %s212, %s215
      %p224 = scmp.eq.s32.totalorder %s27, 1
      %p225 = por %p223, %p224
      %p226 = scmp.ne.s32.totalorder %s215, %s216
      %p227 = scmp.eq.s32.totalorder %s27, 0
      %p228 = por %p226, %p227
      %p229 = scmp.ne.s32.totalorder %s215, %s216
      %p230 = scmp.eq.s32.totalorder %s28, 1
      %p231 = por %p229, %p230
      %p233 = scmp.ne.s32.totalorder %s216, %s232
      %p234 = scmp.eq.s32.totalorder %s28, 0
      %p235 = por %p233, %p234
      %s236 = ssub.s32 %s29, %s41
      %s237 = ssub.s32 %s30, %s37
      %s238 = sor.u32 %s236, %s237
      %p239 = scmp.eq.s32.totalorder %s238, 0
      %s241 = sadd.s32 %s240, 1
      %s242 = scalar_select %p239, %s240, %s241
      %p245 = pneg %p239
      %p246 = scmp.eq.s32.totalorder %s22, 1
      %p247 = por %p245, %p246
      %p248 = scmp.ne.s32.totalorder %s240, %s243
      %p249 = scmp.eq.s32.totalorder %s22, 0
      %p250 = por %p248, %p249
      %p251 = scmp.ne.s32.totalorder %s240, %s243
      %p252 = scmp.eq.s32.totalorder %s27, 1
      %p253 = por %p251, %p252
      %p254 = scmp.ne.s32.totalorder %s243, %s244
      %p255 = scmp.eq.s32.totalorder %s27, 0
      %p256 = por %p254, %p255
      %p257 = scmp.ne.s32.totalorder %s243, %s244
      %p258 = scmp.eq.s32.totalorder %s28, 1
      %p259 = por %p257, %p258
      %p261 = scmp.ne.s32.totalorder %s244, %s260
      %p262 = scmp.eq.s32.totalorder %s28, 0
      %p263 = por %p261, %p262
      %p264 = scmp.le.s32.totalorder 1, %s22
      %p265 = scmp.lt.s32.totalorder %s22, 3
      %p266 = pnand %p264, %p265
      %p267 = pneg %p266
      // Predicated region
      $region9: #{tpu_custom_call.1} parent=5 // pred_check
        _
      $region10: #{tpu_custom_call.1} parent=5 // pred_check_branch
        %269 = sbr.rel (%p266) target = $region12
      $region11: #{tpu_custom_call.1} parent=5 // pred_region
        %s270 = ssub.s32 %s22, 1
        // Predicated region
        $region13: #{tpu_custom_call.1} parent=11 // pred_check
          %p271 = pneg %p137
        $region14: #{tpu_custom_call.1} parent=11 // pred_check_branch
          %273 = sbr.rel (%p271) target = $region16
        $region15: #{tpu_custom_call.1} parent=11 // pred_region
          %s275 = ssub.s32 1024, 1024
          %276 = vsyncadd [#allocation6], %s275
          %s277 = sshll.u32 [#allocation5], 4
          %s278 = int_to_ptr.vmem [resolvable:$true] %s277
          %283 = dma.hbm_to_vmem [thread:$0]  %s3, 1024, %s278, [#allocation6], 64, 64, 4
        $region16: #{tpu_custom_call.1} parent=11 // pred_fallthru
          _
        // Predicated region
        $region17: #{tpu_custom_call.1} parent=11 // pred_check
          %p284 = pneg %p158
        $region18: #{tpu_custom_call.1} parent=11 // pred_check_branch
          %286 = sbr.rel (%p284) target = $region20
        $region19: #{tpu_custom_call.1} parent=11 // pred_region
          _
        $region20: #{tpu_custom_call.1} parent=11 // pred_fallthru
          _
        // Predicated region
        $region21: #{tpu_custom_call.1} parent=11 // pred_check
          %p287 = pneg %p179
        $region22: #{tpu_custom_call.1} parent=11 // pred_check_branch
          %289 = sbr.rel (%p287) target = $region24
        $region23: #{tpu_custom_call.1} parent=11 // pred_region
          %s291 = ssub.s32 1024, 1024
          %292 = vsyncadd [#allocation6], %s291
          %s293 = sshll.u32 [#allocation7], 4
          %s294 = int_to_ptr.vmem [resolvable:$true] %s293
          %299 = dma.hbm_to_vmem [thread:$0]  %s5, 1024, %s294, [#allocation6], 64, 64, 4
        $region24: #{tpu_custom_call.1} parent=11 // pred_fallthru
          _
        // Predicated region
        $region25: #{tpu_custom_call.1} parent=11 // pred_check
          %p300 = pneg %p200
        $region26: #{tpu_custom_call.1} parent=11 // pred_check_branch
          %302 = sbr.rel (%p300) target = $region28
        $region27: #{tpu_custom_call.1} parent=11 // pred_region
          _
        $region28: #{tpu_custom_call.1} parent=11 // pred_fallthru
          _
      $region12: #{tpu_custom_call.1} parent=5 // pred_fallthru
        _
      %p303 = scmp.lt.s32.totalorder %s22, 2
      // Predicated region
      $region29: #{tpu_custom_call.1} parent=5 // pred_check
        %p304 = pneg %p303
      $region30: #{tpu_custom_call.1} parent=5 // pred_check_branch
        %306 = sbr.rel (%p304) target = $region32
      $region31: #{tpu_custom_call.1} parent=5 // pred_region
        // Predicated region
        $region33: #{tpu_custom_call.1} parent=31 // pred_check
          %p307 = pneg %p56
        $region34: #{tpu_custom_call.1} parent=31 // pred_check_branch
          %309 = sbr.rel (%p307) target = $region36
        $region35: #{tpu_custom_call.1} parent=31 // pred_region
          %s310 = smul.u32 8, %s30
          %p311 = scmp.lt.s32.totalorder %s29, 1
          %s312 = scalar_select %p311, %s29, 1
          %p313 = scmp.lt.s32.totalorder %s310, 7
          %s314 = scalar_select %p313, %s310, 7
          %s315 = smul.addr %s312, 8
          %s316 = sadd.s32 %s314, %s315
          %s317 = smul.addr %s316, 8
          %s318 = scalar_lea.vmem %s0, %s317
          %s319 = smul.u32 8, %s30
        $region36: #{tpu_custom_call.1} parent=31 // pred_fallthru
          _
        // Predicated region
        $region37: #{tpu_custom_call.1} parent=31 // pred_check
          %p320 = pneg %p82
        $region38: #{tpu_custom_call.1} parent=31 // pred_check_branch
          %322 = sbr.rel (%p320) target = $region40
        $region39: #{tpu_custom_call.1} parent=31 // pred_region
          %p323 = scmp.lt.s32.totalorder %s29, 1
          %s324 = scalar_select %p323, %s29, 1
          %s325 = smul.addr %s324, 2
          %s326 = scalar_lea.vmem %s1, %s325
        $region40: #{tpu_custom_call.1} parent=31 // pred_fallthru
          _
        // Predicated region
        $region41: #{tpu_custom_call.1} parent=31 // pred_check
          %p327 = pneg %p110
        $region42: #{tpu_custom_call.1} parent=31 // pred_check_branch
          %329 = sbr.rel (%p327) target = $region44
        $region43: #{tpu_custom_call.1} parent=31 // pred_region
          %s330 = sand.u32 %s100, 1
          %s331 = scalar_lea.sflag [#allocation3], %s330
          %s332 = sand.u32 %s100, 1
          %s333 = smul.addr %s332, 64
          %s334 = scalar_lea.vmem [#allocation2], %s333
          %s335 = smul.u32 8, %s30
          %s337 = ssub.s32 1024, 1024
          %338 = vsyncadd %s331, %s337
          %s339 = smul.addr %s29, 8
          %s340 = sadd.s32 %s335, %s339
          %s341 = smul.addr %s340, 128
          %s342 = scalar_lea.hbm %s2, %s341
          %s343 = sshll.u32 %s334, 4
          %s344 = int_to_ptr.vmem [resolvable:$true] %s343
          %349 = dma.hbm_to_vmem [thread:$0]  %s342, 1024, %s344, %s331, 128, 128, 8
        $region44: #{tpu_custom_call.1} parent=31 // pred_fallthru
          _
      $region32: #{tpu_custom_call.1} parent=5 // pred_fallthru
        _
      %p350 = scmp.le.s32.totalorder 1, %s22
      %p351 = scmp.lt.s32.totalorder %s22, 3
      %p352 = pnand %p350, %p351
      %p353 = pneg %p352
      // Predicated region
      $region45: #{tpu_custom_call.1} parent=5 // pred_check
        _
      $region46: #{tpu_custom_call.1} parent=5 // pred_check_branch
        %355 = sbr.rel (%p352) target = $region48
      $region47: #{tpu_custom_call.1} parent=5 // pred_region
        %s356 = ssub.s32 %s22, 1
        %s357 = sand.u32 %s103, 1
        %s358 = scalar_lea.sflag [#allocation3], %s357
        %s359 = sand.u32 %s103, 1
        %s360 = smul.addr %s359, 64
        %s361 = scalar_lea.vmem [#allocation2], %s360
        // Predicated region
        $region49: #{tpu_custom_call.1} parent=47 // pred_check
          %p362 = pneg %p116
        $region50: #{tpu_custom_call.1} parent=47 // pred_check_branch
          %364 = sbr.rel (%p362) target = $region52
        $region51: #{tpu_custom_call.1} parent=47 // pred_region
          %365 = dma.done %s358, 1024
        $region52: #{tpu_custom_call.1} parent=47 // pred_fallthru
          _
        // Predicated region
        $region53: #{tpu_custom_call.1} parent=47 // pred_check
          %p366 = pneg %p137
        $region54: #{tpu_custom_call.1} parent=47 // pred_check_branch
          %368 = sbr.rel (%p366) target = $region56
        $region55: #{tpu_custom_call.1} parent=47 // pred_region
          %369 = dma.done [#allocation6], 1024
        $region56: #{tpu_custom_call.1} parent=47 // pred_fallthru
          _
        // Predicated region
        $region57: #{tpu_custom_call.1} parent=47 // pred_check
          %p370 = pneg %p179
        $region58: #{tpu_custom_call.1} parent=47 // pred_check_branch
          %372 = sbr.rel (%p370) target = $region60
        $region59: #{tpu_custom_call.1} parent=47 // pred_region
          %373 = dma.done [#allocation6], 1024
        $region60: #{tpu_custom_call.1} parent=47 // pred_fallthru
          _
        %s374 = smul.u32 8, %s32
        %p375 = scmp.lt.s32.totalorder %s31, 1
        %s376 = scalar_select %p375, %s31, 1
        %p377 = scmp.lt.s32.totalorder %s374, 7
        %s378 = scalar_select %p377, %s374, 7
        %s379 = smul.addr %s376, 8
        %s380 = sadd.s32 %s378, %s379
        %s381 = smul.addr %s380, 8
        %s382 = scalar_lea.vmem %s0, %s381
        %p383 = pneg %p62
        %p384 = pneg %p59
        %p385 = scmp.lt.s32.totalorder %s31, 1
        %s386 = scalar_select %p385, %s31, 1
        %s387 = smul.addr %s386, 2
        %s388 = scalar_lea.vmem %s1, %s387
        %p389 = pneg %p88
        %p390 = pneg %p85
        %s391 = sand.u32 %s103, 1
        %s392 = scalar_lea.sflag [#allocation3], %s391
        %s393 = sand.u32 %s103, 1
        %s394 = smul.addr %s393, 64
        %s395 = scalar_lea.vmem [#allocation2], %s394
        %p396 = pneg %p116
        %p397 = pneg %p113
        %p398 = pneg %p137
        %p399 = pneg %p134
        %p400 = pneg %p158
        %p401 = pneg %p155
        %p402 = pneg %p179
        %p403 = pneg %p176
        %p404 = pneg %p200
        %p405 = pneg %p197
        %p406 = pneg %p228
        %p407 = pneg %p225
        %p408 = scmp.lt.s32.totalorder %s31, 1
        %s409 = scalar_select %p408, %s31, 1
        %p410 = scmp.lt.s32.totalorder %s32, 0
        %s411 = scalar_select %p410, %s32, 0
        %s412 = smul.addr %s409, 16
        %s413 = sadd.s32 %s411, %s412
        %s414 = smul.addr %s413, 4
        %s415 = scalar_lea.vmem %s7, %s414
        %p416 = pneg %p256
        %p417 = pneg %p253
        %s418 = sand.u32 %s243, 1
        %s419 = scalar_lea.sflag [#allocation4], %s418
        %s420 = sand.u32 %s243, 1
        %s421 = smul.addr %s420, 64
        %s422 = scalar_lea.vmem [#allocation8], %s421
        %s423 = smul.u32 8, %s32
        %p424 = scmp.lt.s32.totalorder %s31, 1
        %s425 = scalar_select %p424, %s31, 1
        %p426 = scmp.lt.s32.totalorder %s423, 7
        %s427 = scalar_select %p426, %s423, 7
        %s428 = smul.addr %s425, 8
        %s429 = sadd.s32 %s427, %s428
        %s430 = smul.addr %s429, 8
        %s431 = scalar_lea.vmem %s0, %s430
        %s432 = smul.u32 8, %s32
        %p433 = scmp.lt.s32.totalorder %s31, 1
        %s434 = scalar_select %p433, %s31, 1
        %s435 = smul.addr %s434, 2
        %s436 = scalar_lea.vmem %s1, %s435
        %s437 = smul.u32 8, %s32
        %p438 = scmp.lt.s32.totalorder %s31, 1
        %s439 = scalar_select %p438, %s31, 1
        %p440 = scmp.lt.s32.totalorder %s32, 0
        %s441 = scalar_select %p440, %s32, 0
        %s442 = smul.addr %s439, 16
        %s443 = sadd.s32 %s441, %s442
        %s444 = smul.addr %s443, 4
        %s445 = scalar_lea.vmem %s7, %s444
        %s446 = smul.u32 8, %s32
        %v448 = vld [vmem:[%s431] sm:$0xff]
        %v449 = vld [vmem:[%s431 + $0x8] sm:$0xff]
        %v450 = vld [vmem:[%s431 + $0x10] sm:$0xff]
        %v451 = vld [vmem:[%s431 + $0x18] sm:$0xff]
        %v452 = vld [vmem:[%s431 + $0x20] sm:$0xff]
        %v453 = vld [vmem:[%s431 + $0x28] sm:$0xff]
        %v454 = vld [vmem:[%s431 + $0x30] sm:$0xff]
        %v455 = vld [vmem:[%s431 + $0x38] sm:$0xff]
        %v456 = vld [vmem:[%s436] sm:$0x3]
        %v457 = vlaneseq
        %v458 = vshrl.u32 %v457, 7
        %v459 = vsub.s32 0, %v458
        %v460 = vrot.slane %v456, %v459
        %v461 = vsub.f32 %v448, %v460
        %v462 = vsub.f32 %v449, %v460
        %v463 = vsub.f32 %v450, %v460
        %v464 = vsub.f32 %v451, %v460
        %v465 = vsub.f32 %v452, %v460
        %v466 = vsub.f32 %v453, %v460
        %v467 = vsub.f32 %v454, %v460
        %v468 = vsub.f32 %v455, %v460
        %v469 = vlaneseq
        %v470 = vshrl.u32 %v469, 7
        %v471 = vsub.s32 1, %v470
        %v472 = vrot.slane %v456, %v471
        %v473 = vmul.f32 %v461, %v472
        %v474 = vmul.f32 %v462, %v472
        %v475 = vmul.f32 %v463, %v472
        %v476 = vmul.f32 %v464, %v472
        %v477 = vmul.f32 %v465, %v472
        %v478 = vmul.f32 %v466, %v472
        %v479 = vmul.f32 %v467, %v472
        %v480 = vmul.f32 %v468, %v472
        %v481 = vld [vmem:[#allocation5] sm:$0xf]
        %v482 = vld [vmem:[#allocation5 + $0x4] sm:$0xf]
        %v483 = vld [vmem:[#allocation5 + $0x8] sm:$0xf]
        %v484 = vld [vmem:[#allocation5 + $0xc] sm:$0xf]
        %v485 = vld [vmem:[#allocation5 + $0x10] sm:$0xf]
        %v486 = vld [vmem:[#allocation5 + $0x14] sm:$0xf]
        %v487 = vld [vmem:[#allocation5 + $0x18] sm:$0xf]
        %v488 = vld [vmem:[#allocation5 + $0x1c] sm:$0xf]
        %v489 = vld [vmem:[#allocation5 + $0x20] sm:$0xf]
        %v490 = vld [vmem:[#allocation5 + $0x24] sm:$0xf]
        %v491 = vld [vmem:[#allocation5 + $0x28] sm:$0xf]
        %v492 = vld [vmem:[#allocation5 + $0x2c] sm:$0xf]
        %v493 = vld [vmem:[#allocation5 + $0x30] sm:$0xf]
        %v494 = vld [vmem:[#allocation5 + $0x34] sm:$0xf]
        %v495 = vld [vmem:[#allocation5 + $0x38] sm:$0xf]
        %v496 = vld [vmem:[#allocation5 + $0x3c] sm:$0xf]
        %v497 = vpack.c.bf16 %v474, %v473
        %v498 = vpack.c.bf16 %v476, %v475
        %v499 = vpack.c.bf16 %v478, %v477
        %v500 = vpack.c.bf16 %v480, %v479
        %v501 = vld [vmem:[%s4] sm:$0xff]
        %v502 = vld [vmem:[%s4 + $0x8] sm:$0xff]
        %v503 = vld [vmem:[%s4 + $0x10] sm:$0xff]
        %v504 = vld [vmem:[%s4 + $0x18] sm:$0xff]
        %v505 = vld [vmem:[%s4 + $0x20] sm:$0xff]
        %v506 = vld [vmem:[%s4 + $0x28] sm:$0xff]
        %v507 = vld [vmem:[%s4 + $0x30] sm:$0xff]
        %v508 = vld [vmem:[%s4 + $0x38] sm:$0xff]
        %v509 = vld [vmem:[%s4 + $0x40] sm:$0xff]
        %v510 = vld [vmem:[%s4 + $0x48] sm:$0xff]
        %v511 = vld [vmem:[%s4 + $0x50] sm:$0xff]
        %v512 = vld [vmem:[%s4 + $0x58] sm:$0xff]
        %v513 = vld [vmem:[%s4 + $0x60] sm:$0xff]
        %v514 = vld [vmem:[%s4 + $0x68] sm:$0xff]
        %v515 = vld [vmem:[%s4 + $0x70] sm:$0xff]
        %v516 = vld [vmem:[%s4 + $0x78] sm:$0xff]
        %518 = vset.pattern.permute.xlu0 0
        %519 = vperm.xlu0 %518, %v501
        %v520 = vpop.permute.xlu0 %519
        %523 = vset.pattern.permute.xlu0 0
        %524 = vperm.xlu0 %523, %v502
        %v525 = vpop.permute.xlu0 %524
        %528 = vset.pattern.permute.xlu0 0
        %529 = vperm.xlu0 %528, %v503
        %v530 = vpop.permute.xlu0 %529
        %533 = vset.pattern.permute.xlu0 0
        %534 = vperm.xlu0 %533, %v504
        %v535 = vpop.permute.xlu0 %534
        %538 = vset.pattern.permute.xlu0 0
        %539 = vperm.xlu0 %538, %v505
        %v540 = vpop.permute.xlu0 %539
        %543 = vset.pattern.permute.xlu0 0
        %544 = vperm.xlu0 %543, %v506
        %v545 = vpop.permute.xlu0 %544
        %548 = vset.pattern.permute.xlu0 0
        %549 = vperm.xlu0 %548, %v507
        %v550 = vpop.permute.xlu0 %549
        %553 = vset.pattern.permute.xlu0 0
        %554 = vperm.xlu0 %553, %v508
        %v555 = vpop.permute.xlu0 %554
        %558 = vset.pattern.permute.xlu0 0
        %559 = vperm.xlu0 %558, %v509
        %v560 = vpop.permute.xlu0 %559
        %563 = vset.pattern.permute.xlu0 0
        %564 = vperm.xlu0 %563, %v510
        %v565 = vpop.permute.xlu0 %564
        %568 = vset.pattern.permute.xlu0 0
        %569 = vperm.xlu0 %568, %v511
        %v570 = vpop.permute.xlu0 %569
        %573 = vset.pattern.permute.xlu0 0
        %574 = vperm.xlu0 %573, %v512
        %v575 = vpop.permute.xlu0 %574
        %578 = vset.pattern.permute.xlu0 0
        %579 = vperm.xlu0 %578, %v513
        %v580 = vpop.permute.xlu0 %579
        %583 = vset.pattern.permute.xlu0 0
        %584 = vperm.xlu0 %583, %v514
        %v585 = vpop.permute.xlu0 %584
        %588 = vset.pattern.permute.xlu0 0
        %589 = vperm.xlu0 %588, %v515
        %v590 = vpop.permute.xlu0 %589
        %593 = vset.pattern.permute.xlu0 0
        %594 = vperm.xlu0 %593, %v516
        %v595 = vpop.permute.xlu0 %594
        %v613 = vunpack.c.l.b16 %v481
        %v614 = vunpack.c.l.b16 %v482
        %v615 = vunpack.c.l.b16 %v483
        %v616 = vunpack.c.l.b16 %v484
        %v617 = vunpack.c.l.b16 %v485
        %v618 = vunpack.c.l.b16 %v486
        %v619 = vunpack.c.l.b16 %v487
        %v620 = vunpack.c.l.b16 %v488
        %v621 = vunpack.c.l.b16 %v489
        %v622 = vunpack.c.l.b16 %v490
        %v623 = vunpack.c.l.b16 %v491
        %v624 = vunpack.c.l.b16 %v492
        %v625 = vunpack.c.l.b16 %v493
        %v626 = vunpack.c.l.b16 %v494
        %v627 = vunpack.c.l.b16 %v495
        %v628 = vunpack.c.l.b16 %v496
        %v629 = vpack.c.b16 %v614, %v613
        %v630 = vpack.c.b16 %v616, %v615
        %v631 = vpack.c.b16 %v618, %v617
        %v632 = vpack.c.b16 %v620, %v619
        %v633 = vpack.c.b16 %v622, %v621
        %v634 = vpack.c.b16 %v624, %v623
        %v635 = vpack.c.b16 %v626, %v625
        %v636 = vpack.c.b16 %v628, %v627
        %645 = vmatprep.subr.bf16.mxu0 0
        %646 = vmatpush1.bf16.xpose.msra.mxu0 %v497
        %647 = vmatprep.subr.bf16.mxu0 0
        %648 = vmatpush1.bf16.xpose.msra.mxu0 %v498
        %649 = vmatprep.subr.bf16.mxu0 0
        %650 = vmatpush1.bf16.xpose.msra.mxu0 %v499
        %651 = vmatprep.subr.bf16.mxu0 0
        %652 = vmatpush1.bf16.xpose.msra.mxu0 %v500
        %653 = vmatprep.subr.bf16.mxu0 0
        %654 = vmatpush1.bf16.xpose.msra.mxu0 0
        %655 = vmatprep.subr.bf16.mxu0 0
        %656 = vmatpush1.bf16.xpose.msra.mxu0 0
        %657 = vmatprep.subr.bf16.mxu0 0
        %658 = vmatpush1.bf16.xpose.msra.mxu0 0
        %659 = vmatprep.subr.bf16.mxu0 0
        %660 = vmatpush1.bf16.xpose.msra.mxu0 0
        %661 = vmatprep.subr.bf16.mxu0 0
        %662 = vmatpush1.bf16.xpose.msra.mxu0 0
        %663 = vmatprep.subr.bf16.mxu0 0
        %664 = vmatpush1.bf16.xpose.msra.mxu0 0
        %665 = vmatprep.subr.bf16.mxu0 0
        %666 = vmatpush1.bf16.xpose.msra.mxu0 0
        %667 = vmatprep.subr.bf16.mxu0 0
        %668 = vmatpush1.bf16.xpose.msra.mxu0 0
        %669 = vmatprep.subr.bf16.mxu0 0
        %670 = vmatpush1.bf16.xpose.msra.mxu0 0
        %671 = vmatprep.subr.bf16.mxu0 0
        %672 = vmatpush1.bf16.xpose.msra.mxu0 0
        %673 = vmatprep.subr.bf16.mxu0 0
        %674 = vmatpush1.bf16.xpose.msra.mxu0 0
        %675 = vmatprep.subr.bf16.mxu0 0
        %676 = vmatpush1.bf16.xpose.msra.mxu0 0
        %677 = vmatprep.mubr.bf16.mxu0 0
        %678 = vmatmul.mubr.bf16.gmra.mrb[0].mxu0 %v629
        %v679 = vpop.f32.mrb[0].mxu0
        %v680 = vadd.f32 %v520, %v679
        %v681 = vpop.f32.mrb[0].mxu0
        %v682 = vpop.f32.mrb[0].mxu0
        %v683 = vadd.f32 %v525, %v682
        %v684 = vpop.f32.mrb[0].mxu0
        %685 = vmatprep.mubr.bf16.mxu0 0
        %686 = vmatmul.mubr.bf16.gmra.mrb[0].mxu0 %v630
        %v687 = vpop.f32.mrb[0].mxu0
        %v688 = vadd.f32 %v530, %v687
        %v689 = vpop.f32.mrb[0].mxu0
        %v690 = vpop.f32.mrb[0].mxu0
        %v691 = vadd.f32 %v535, %v690
        %v692 = vpop.f32.mrb[0].mxu0
        %693 = vmatprep.mubr.bf16.mxu0 0
        %694 = vmatmul.mubr.bf16.gmra.mrb[0].mxu0 %v631
        %v695 = vpop.f32.mrb[0].mxu0
        %v696 = vadd.f32 %v540, %v695
        %v697 = vpop.f32.mrb[0].mxu0
        %v698 = vpop.f32.mrb[0].mxu0
        %v699 = vadd.f32 %v545, %v698
        %v700 = vpop.f32.mrb[0].mxu0
        %701 = vmatprep.mubr.bf16.mxu0 0
        %702 = vmatmul.mubr.bf16.gmra.mrb[0].mxu0 %v632
        %v703 = vpop.f32.mrb[0].mxu0
        %v704 = vadd.f32 %v550, %v703
        %v705 = vpop.f32.mrb[0].mxu0
        %v706 = vpop.f32.mrb[0].mxu0
        %v707 = vadd.f32 %v555, %v706
        %v708 = vpop.f32.mrb[0].mxu0
        %709 = vmatprep.mubr.bf16.mxu0 0
        %710 = vmatmul.mubr.bf16.gmra.mrb[0].mxu0 %v633
        %v711 = vpop.f32.mrb[0].mxu0
        %v712 = vadd.f32 %v560, %v711
        %v713 = vpop.f32.mrb[0].mxu0
        %v714 = vpop.f32.mrb[0].mxu0
        %v715 = vadd.f32 %v565, %v714
        %v716 = vpop.f32.mrb[0].mxu0
        %717 = vmatprep.mubr.bf16.mxu0 0
        %718 = vmatmul.mubr.bf16.gmra.mrb[0].mxu0 %v634
        %v719 = vpop.f32.mrb[0].mxu0
        %v720 = vadd.f32 %v570, %v719
        %v721 = vpop.f32.mrb[0].mxu0
        %v722 = vpop.f32.mrb[0].mxu0
        %v723 = vadd.f32 %v575, %v722
        %v724 = vpop.f32.mrb[0].mxu0
        %725 = vmatprep.mubr.bf16.mxu0 0
        %726 = vmatmul.mubr.bf16.gmra.mrb[0].mxu0 %v635
        %v727 = vpop.f32.mrb[0].mxu0
        %v728 = vadd.f32 %v580, %v727
        %v729 = vpop.f32.mrb[0].mxu0
        %v730 = vpop.f32.mrb[0].mxu0
        %v731 = vadd.f32 %v585, %v730
        %v732 = vpop.f32.mrb[0].mxu0
        %733 = vmatprep.mubr.bf16.mxu0 0
        %734 = vmatmul.mubr.bf16.gmra.mrb[0].mxu0 %v636
        %v735 = vpop.f32.mrb[0].mxu0
        %v736 = vadd.f32 %v590, %v735
        %v737 = vpop.f32.mrb[0].mxu0
        %v738 = vpop.f32.mrb[0].mxu0
        %v739 = vadd.f32 %v595, %v738
        %v740 = vpop.f32.mrb[0].mxu0
        %741 = vdwg.mxu0
        %v742 = vpack.c.bf16 %v683, %v680
        %v743 = vpack.c.bf16 %v691, %v688
        %v744 = vpack.c.bf16 %v699, %v696
        %v745 = vpack.c.bf16 %v707, %v704
        %v746 = vpack.c.bf16 %v715, %v712
        %v747 = vpack.c.bf16 %v723, %v720
        %v748 = vpack.c.bf16 %v731, %v728
        %v749 = vpack.c.bf16 %v739, %v736
        %v758 = vunpack.c.l.b16 %v742
        %v759 = vunpack.c.h.b16 %v742
        %v760 = vunpack.c.l.b16 %v743
        %v761 = vunpack.c.h.b16 %v743
        %v762 = vunpack.c.l.b16 %v744
        %v763 = vunpack.c.h.b16 %v744
        %v764 = vunpack.c.l.b16 %v745
        %v765 = vunpack.c.h.b16 %v745
        %v766 = vunpack.c.l.b16 %v746
        %v767 = vunpack.c.h.b16 %v746
        %v768 = vunpack.c.l.b16 %v747
        %v769 = vunpack.c.h.b16 %v747
        %v770 = vunpack.c.l.b16 %v748
        %v771 = vunpack.c.h.b16 %v748
        %v772 = vunpack.c.l.b16 %v749
        %v773 = vunpack.c.h.b16 %v749
        %v774 = vpack.c.b16 %v758, %v758
        %v775 = vpack.c.b16 %v759, %v759
        %v776 = vpack.c.b16 %v760, %v760
        %v777 = vpack.c.b16 %v761, %v761
        %v778 = vpack.c.b16 %v762, %v762
        %v779 = vpack.c.b16 %v763, %v763
        %v780 = vpack.c.b16 %v764, %v764
        %v781 = vpack.c.b16 %v765, %v765
        %v782 = vpack.c.b16 %v766, %v766
        %v783 = vpack.c.b16 %v767, %v767
        %v784 = vpack.c.b16 %v768, %v768
        %v785 = vpack.c.b16 %v769, %v769
        %v786 = vpack.c.b16 %v770, %v770
        %v787 = vpack.c.b16 %v771, %v771
        %v788 = vpack.c.b16 %v772, %v772
        %v789 = vpack.c.b16 %v773, %v773
        %vm806 = vcmask 519168
        %807 = vst.msk [vmem:[%s445] sm:$0xf] %vm806, %v774
        %808 = vst.msk [vmem:[%s445 + $0x4] sm:$0xf] %vm806, %v775
        %809 = vst.msk [vmem:[%s445 + $0x8] sm:$0xf] %vm806, %v776
        %810 = vst.msk [vmem:[%s445 + $0xc] sm:$0xf] %vm806, %v777
        %811 = vst.msk [vmem:[%s445 + $0x10] sm:$0xf] %vm806, %v778
        %812 = vst.msk [vmem:[%s445 + $0x14] sm:$0xf] %vm806, %v779
        %813 = vst.msk [vmem:[%s445 + $0x18] sm:$0xf] %vm806, %v780
        %814 = vst.msk [vmem:[%s445 + $0x1c] sm:$0xf] %vm806, %v781
        %815 = vst.msk [vmem:[%s445 + $0x20] sm:$0xf] %vm806, %v782
        %816 = vst.msk [vmem:[%s445 + $0x24] sm:$0xf] %vm806, %v783
        %817 = vst.msk [vmem:[%s445 + $0x28] sm:$0xf] %vm806, %v784
        %818 = vst.msk [vmem:[%s445 + $0x2c] sm:$0xf] %vm806, %v785
        %819 = vst.msk [vmem:[%s445 + $0x30] sm:$0xf] %vm806, %v786
        %820 = vst.msk [vmem:[%s445 + $0x34] sm:$0xf] %vm806, %v787
        %821 = vst.msk [vmem:[%s445 + $0x38] sm:$0xf] %vm806, %v788
        %822 = vst.msk [vmem:[%s445 + $0x3c] sm:$0xf] %vm806, %v789
        %v823 = vld [vmem:[%s361] sm:$0xff]
        %v824 = vld [vmem:[%s361 + $0x8] sm:$0xff]
        %v825 = vld [vmem:[%s361 + $0x10] sm:$0xff]
        %v826 = vld [vmem:[%s361 + $0x18] sm:$0xff]
        %v827 = vld [vmem:[%s361 + $0x20] sm:$0xff]
        %v828 = vld [vmem:[%s361 + $0x28] sm:$0xff]
        %v829 = vld [vmem:[%s361 + $0x30] sm:$0xff]
        %v830 = vld [vmem:[%s361 + $0x38] sm:$0xff]
        %v831 = vpack.c.bf16 %v824, %v823
        %v832 = vpack.c.bf16 %v826, %v825
        %v833 = vpack.c.bf16 %v828, %v827
        %v834 = vpack.c.bf16 %v830, %v829
        %v835 = vld [vmem:[#allocation7] sm:$0xf]
        %v836 = vld [vmem:[#allocation7 + $0x4] sm:$0xf]
        %v837 = vld [vmem:[#allocation7 + $0x8] sm:$0xf]
        %v838 = vld [vmem:[#allocation7 + $0xc] sm:$0xf]
        %v839 = vld [vmem:[#allocation7 + $0x10] sm:$0xf]
        %v840 = vld [vmem:[#allocation7 + $0x14] sm:$0xf]
        %v841 = vld [vmem:[#allocation7 + $0x18] sm:$0xf]
        %v842 = vld [vmem:[#allocation7 + $0x1c] sm:$0xf]
        %v843 = vld [vmem:[#allocation7 + $0x20] sm:$0xf]
        %v844 = vld [vmem:[#allocation7 + $0x24] sm:$0xf]
        %v845 = vld [vmem:[#allocation7 + $0x28] sm:$0xf]
        %v846 = vld [vmem:[#allocation7 + $0x2c] sm:$0xf]
        %v847 = vld [vmem:[#allocation7 + $0x30] sm:$0xf]
        %v848 = vld [vmem:[#allocation7 + $0x34] sm:$0xf]
        %v849 = vld [vmem:[#allocation7 + $0x38] sm:$0xf]
        %v850 = vld [vmem:[#allocation7 + $0x3c] sm:$0xf]
        %v851 = vld [vmem:[%s6] sm:$0x1]
        %v853 = vlaneseq
        %v854 = vshrl.u32 %v853, 7
        %v855 = vsub.s32 0, %v854
        %v856 = vrot.slane %v851, %v855
        %v874 = vunpack.c.l.b16 %v835
        %v875 = vunpack.c.l.b16 %v836
        %v876 = vunpack.c.l.b16 %v837
        %v877 = vunpack.c.l.b16 %v838
        %v878 = vunpack.c.l.b16 %v839
        %v879 = vunpack.c.l.b16 %v840
        %v880 = vunpack.c.l.b16 %v841
        %v881 = vunpack.c.l.b16 %v842
        %v882 = vunpack.c.l.b16 %v843
        %v883 = vunpack.c.l.b16 %v844
        %v884 = vunpack.c.l.b16 %v845
        %v885 = vunpack.c.l.b16 %v846
        %v886 = vunpack.c.l.b16 %v847
        %v887 = vunpack.c.l.b16 %v848
        %v888 = vunpack.c.l.b16 %v849
        %v889 = vunpack.c.l.b16 %v850
        %v890 = vpack.c.b16 %v875, %v874
        %v891 = vpack.c.b16 %v877, %v876
        %v892 = vpack.c.b16 %v879, %v878
        %v893 = vpack.c.b16 %v881, %v880
        %v894 = vpack.c.b16 %v883, %v882
        %v895 = vpack.c.b16 %v885, %v884
        %v896 = vpack.c.b16 %v887, %v886
        %v897 = vpack.c.b16 %v889, %v888
        %906 = vmatprep.subr.bf16.mxu0 0
        %907 = vmatpush1.bf16.msra.mxu0 %v890
        %908 = vmatprep.subr.bf16.mxu0 0
        %909 = vmatpush1.bf16.msra.mxu0 %v891
        %910 = vmatprep.subr.bf16.mxu0 0
        %911 = vmatpush1.bf16.msra.mxu0 %v892
        %912 = vmatprep.subr.bf16.mxu0 0
        %913 = vmatpush1.bf16.msra.mxu0 %v893
        %914 = vmatprep.subr.bf16.mxu0 0
        %915 = vmatpush1.bf16.msra.mxu0 %v894
        %916 = vmatprep.subr.bf16.mxu0 0
        %917 = vmatpush1.bf16.msra.mxu0 %v895
        %918 = vmatprep.subr.bf16.mxu0 0
        %919 = vmatpush1.bf16.msra.mxu0 %v896
        %920 = vmatprep.subr.bf16.mxu0 0
        %921 = vmatpush1.bf16.msra.mxu0 %v897
        %922 = vmatprep.subr.bf16.mxu0 0
        %923 = vmatpush1.bf16.msra.mxu0 0
        %924 = vmatprep.subr.bf16.mxu0 0
        %925 = vmatpush1.bf16.msra.mxu0 0
        %926 = vmatprep.subr.bf16.mxu0 0
        %927 = vmatpush1.bf16.msra.mxu0 0
        %928 = vmatprep.subr.bf16.mxu0 0
        %929 = vmatpush1.bf16.msra.mxu0 0
        %930 = vmatprep.subr.bf16.mxu0 0
        %931 = vmatpush1.bf16.msra.mxu0 0
        %932 = vmatprep.subr.bf16.mxu0 0
        %933 = vmatpush1.bf16.msra.mxu0 0
        %934 = vmatprep.subr.bf16.mxu0 0
        %935 = vmatpush1.bf16.msra.mxu0 0
        %936 = vmatprep.subr.bf16.mxu0 0
        %937 = vmatpush1.bf16.msra.mxu0 0
        %938 = vmatprep.mubr.bf16.mxu0 0
        %939 = vmatmul.mubr.bf16.gmra.mrb[0].mxu0 %v831
        %v940 = vpop.f32.mrb[0].mxu0
        %v941 = vadd.f32 %v856, %v940
        %v942 = vpop.f32.mrb[0].mxu0
        %v943 = vpop.f32.mrb[0].mxu0
        %v944 = vadd.f32 %v856, %v943
        %v945 = vpop.f32.mrb[0].mxu0
        %946 = vmatprep.mubr.bf16.mxu0 0
        %947 = vmatmul.mubr.bf16.gmra.mrb[0].mxu0 %v832
        %v948 = vpop.f32.mrb[0].mxu0
        %v949 = vadd.f32 %v856, %v948
        %v950 = vpop.f32.mrb[0].mxu0
        %v951 = vpop.f32.mrb[0].mxu0
        %v952 = vadd.f32 %v856, %v951
        %v953 = vpop.f32.mrb[0].mxu0
        %954 = vmatprep.mubr.bf16.mxu0 0
        %955 = vmatmul.mubr.bf16.gmra.mrb[0].mxu0 %v833
        %v956 = vpop.f32.mrb[0].mxu0
        %v957 = vadd.f32 %v856, %v956
        %v958 = vpop.f32.mrb[0].mxu0
        %v959 = vpop.f32.mrb[0].mxu0
        %v960 = vadd.f32 %v856, %v959
        %v961 = vpop.f32.mrb[0].mxu0
        %962 = vmatprep.mubr.bf16.mxu0 0
        %963 = vmatmul.mubr.bf16.gmra.mrb[0].mxu0 %v834
        %v964 = vpop.f32.mrb[0].mxu0
        %v965 = vadd.f32 %v856, %v964
        %v966 = vpop.f32.mrb[0].mxu0
        %v967 = vpop.f32.mrb[0].mxu0
        %v968 = vadd.f32 %v856, %v967
        %v969 = vpop.f32.mrb[0].mxu0
        %970 = vdwg.mxu0
        %v971 = vmul.f32 %v941, %v941
        %v972 = vmul.f32 %v944, %v944
        %v973 = vmul.f32 %v949, %v949
        %v974 = vmul.f32 %v952, %v952
        %v975 = vmul.f32 %v957, %v957
        %v976 = vmul.f32 %v960, %v960
        %v977 = vmul.f32 %v965, %v965
        %v978 = vmul.f32 %v968, %v968
        %v979 = vpack.c.bf16 %v944, %v941
        %v980 = vpack.c.bf16 %v972, %v971
        %v981 = vpack.c.bf16 %v952, %v949
        %v982 = vpack.c.bf16 %v974, %v973
        %v983 = vpack.c.bf16 %v960, %v957
        %v984 = vpack.c.bf16 %v976, %v975
        %v985 = vpack.c.bf16 %v968, %v965
        %v986 = vpack.c.bf16 %v978, %v977
        %v995 = vunpack.c.l.b16 %v979
        %v996 = vunpack.c.l.b16 %v980
        %v997 = vunpack.c.h.b16 %v979
        %v998 = vunpack.c.h.b16 %v980
        %v999 = vunpack.c.l.b16 %v981
        %v1000 = vunpack.c.l.b16 %v982
        %v1001 = vunpack.c.h.b16 %v981
        %v1002 = vunpack.c.h.b16 %v982
        %v1003 = vunpack.c.l.b16 %v983
        %v1004 = vunpack.c.l.b16 %v984
        %v1005 = vunpack.c.h.b16 %v983
        %v1006 = vunpack.c.h.b16 %v984
        %v1007 = vunpack.c.l.b16 %v985
        %v1008 = vunpack.c.l.b16 %v986
        %v1009 = vunpack.c.h.b16 %v985
        %v1010 = vunpack.c.h.b16 %v986
        %v1011 = vpack.c.b16 %v996, %v995
        %v1012 = vpack.c.b16 %v998, %v997
        %v1013 = vpack.c.b16 %v1000, %v999
        %v1014 = vpack.c.b16 %v1002, %v1001
        %v1015 = vpack.c.b16 %v1004, %v1003
        %v1016 = vpack.c.b16 %v1006, %v1005
        %v1017 = vpack.c.b16 %v1008, %v1007
        %v1018 = vpack.c.b16 %v1010, %v1009
        %1027 = vst [vmem:[%s422] sm:$0xff] %v1011
        %1028 = vst [vmem:[%s422 + $0x8] sm:$0xff] %v1012
        %1029 = vst [vmem:[%s422 + $0x10] sm:$0xff] %v1013
        %1030 = vst [vmem:[%s422 + $0x18] sm:$0xff] %v1014
        %1031 = vst [vmem:[%s422 + $0x20] sm:$0xff] %v1015
        %1032 = vst [vmem:[%s422 + $0x28] sm:$0xff] %v1016
        %1033 = vst [vmem:[%s422 + $0x30] sm:$0xff] %v1017
        %1034 = vst [vmem:[%s422 + $0x38] sm:$0xff] %v1018
        %p1035 = scmp.lt.s32.totalorder %s31, 1
        %s1036 = scalar_select %p1035, %s31, 1
        %p1037 = scmp.lt.s32.totalorder %s32, 0
        %s1038 = scalar_select %p1037, %s32, 0
        %s1039 = smul.addr %s1036, 16
        %s1040 = sadd.s32 %s1038, %s1039
        %s1041 = smul.addr %s1040, 4
        %s1042 = scalar_lea.vmem %s7, %s1041
        %s1043 = sand.u32 %s243, 1
        %s1044 = scalar_lea.sflag [#allocation4], %s1043
        %s1045 = sand.u32 %s243, 1
        %s1046 = smul.addr %s1045, 64
        %s1047 = scalar_lea.vmem [#allocation8], %s1046
        // Predicated region
        $region61: #{tpu_custom_call.1} parent=47 // pred_check
          %p1048 = pneg %p225
        $region62: #{tpu_custom_call.1} parent=47 // pred_check_branch
          %1050 = sbr.rel (%p1048) target = $region64
        $region63: #{tpu_custom_call.1} parent=47 // pred_region
          _
        $region64: #{tpu_custom_call.1} parent=47 // pred_fallthru
          _
        // Predicated region
        $region65: #{tpu_custom_call.1} parent=47 // pred_check
          %p1051 = pneg %p253
        $region66: #{tpu_custom_call.1} parent=47 // pred_check_branch
          %1053 = sbr.rel (%p1051) target = $region68
        $region67: #{tpu_custom_call.1} parent=47 // pred_region
          %s1054 = smul.u32 8, %s32
          %s1056 = ssub.s32 1024, 1024
          %1057 = vsyncadd %s1044, %s1056
          %s1058 = smul.addr %s1054, 2
          %s1059 = smul.addr %s31, 16
          %s1060 = sadd.s32 %s1058, %s1059
          %s1061 = smul.addr %s1060, 64
          %s1062 = scalar_lea.hbm %s8, %s1061
          %s1063 = sshll.u32 %s1047, 4
          %s1064 = int_to_ptr.vmem [resolvable:$true] %s1063
          %1069 = dma.vmem_to_hbm [thread:$0]  %s1064, 1024, %s1062, %s1044, 128, 128, 8
        $region68: #{tpu_custom_call.1} parent=47 // pred_fallthru
          _
      $region48: #{tpu_custom_call.1} parent=5 // pred_fallthru
        _
      %p1070 = scmp.le.s32.totalorder 2, %s22
      // Predicated region
      $region69: #{tpu_custom_call.1} parent=5 // pred_check
        %p1071 = pneg %p1070
      $region70: #{tpu_custom_call.1} parent=5 // pred_check_branch
        %1073 = sbr.rel (%p1071) target = $region72
      $region71: #{tpu_custom_call.1} parent=5 // pred_region
        %s1074 = ssub.s32 %s22, 2
        // Predicated region
        $region73: #{tpu_custom_call.1} parent=71 // pred_check
          %p1075 = pneg %p231
        $region74: #{tpu_custom_call.1} parent=71 // pred_check_branch
          %1077 = sbr.rel (%p1075) target = $region76
        $region75: #{tpu_custom_call.1} parent=71 // pred_region
          %p1078 = scmp.lt.s32.totalorder %s33, 1
          %s1079 = scalar_select %p1078, %s33, 1
          %p1080 = scmp.lt.s32.totalorder %s34, 0
          %s1081 = scalar_select %p1080, %s34, 0
          %s1082 = smul.addr %s1079, 16
          %s1083 = sadd.s32 %s1081, %s1082
          %s1084 = smul.addr %s1083, 4
          %s1085 = scalar_lea.vmem %s7, %s1084
        $region76: #{tpu_custom_call.1} parent=71 // pred_fallthru
          _
        // Predicated region
        $region77: #{tpu_custom_call.1} parent=71 // pred_check
          %p1086 = pneg %p259
        $region78: #{tpu_custom_call.1} parent=71 // pred_check_branch
          %1088 = sbr.rel (%p1086) target = $region80
        $region79: #{tpu_custom_call.1} parent=71 // pred_region
          %s1089 = sand.u32 %s244, 1
          %s1090 = scalar_lea.sflag [#allocation4], %s1089
          %s1091 = sand.u32 %s244, 1
          %s1092 = smul.addr %s1091, 64
          %s1093 = scalar_lea.vmem [#allocation8], %s1092
          %1094 = dma.done %s1090, 1024
        $region80: #{tpu_custom_call.1} parent=71 // pred_fallthru
          _
      $region72: #{tpu_custom_call.1} parent=5 // pred_fallthru
        _
    $region6: #{tpu_custom_call.1} parent=1 // loop_footer
      %s26 = sadd.s32 1, %s22
    $region7: #{tpu_custom_call.1} parent=1 // loop_footer_branch
      %21 = sbr.rel target = $region3
    $region8: #{tpu_custom_call.1} parent=1 // loop_exit
      _
    %1095 = vsyncpa [#allocation3], 1
    %s1096 = scalar_lea.sflag [#allocation3], 1
    %1097 = vsyncpa %s1096, 1
    %1098 = vsyncpa [#allocation6], 1
    %1099 = vsyncpa [#allocation4], 1
    %s1100 = scalar_lea.sflag [#allocation4], 1
    %1101 = vsyncpa %s1100, 1

</llo_original>
